<compile_context>
chip_gen: v6e
topology: v6e:2x2x1
jax: 0.10.0
libtpu: 0.0.40
codegen_flags: <defaults>
</compile_context>

<pallas_src>
import functools

import jax
import jax.numpy as jnp
from jax import lax
from jax.experimental import pallas as pl
from jax.experimental.pallas import tpu as pltpu


def _round_up(x, m):
    return ((x + m - 1) // m) * m


def _cdiv(a, b):
    return (a + b - 1) // b


def _std_kernel(y_ref, g_ref, m_ref, o_ref,
                sm_ref, sl_ref, slm_ref, sl2m_ref, *, hw, t):
    """Grid = (batch_blocks, spatial_blocks); the spatial axis is the reduction.

    Per-(n, c) sufficient statistics accumulated over the spatial axis:
      sm   = sum(mask)
      sl   = sum(loss)                with loss = (y - g) * mask
      slm  = sum(loss * mask)
      sl2m = sum(loss^2 * mask)
    Finalize: predot = sum_c sm (per batch row), mean = sl / predot,
              std = sqrt((sl2m - 2*mean*slm + mean^2*sm) / predot).
    """
    sb = pl.program_id(1)

    @pl.when(sb == 0)
    def _():
        sm_ref[...] = jnp.zeros_like(sm_ref)
        sl_ref[...] = jnp.zeros_like(sl_ref)
        slm_ref[...] = jnp.zeros_like(slm_ref)
        sl2m_ref[...] = jnp.zeros_like(sl2m_ref)

    y = y_ref[...].astype(jnp.float32)   # (bn, C, t)
    g = g_ref[...].astype(jnp.float32)   # (bn, C, t)
    m = m_ref[...].astype(jnp.float32)   # (bn, C, t)

    if hw % t != 0:
        # Ragged spatial tail: the last block extends past HW.  Out-of-bounds
        # lanes hold garbage (possibly NaN/Inf), so zero both mask and diff.
        lane = lax.broadcasted_iota(jnp.int32, y.shape, dimension=2)
        limit = hw - sb * t              # >= t for every non-last block
        valid = lane < limit
        m = jnp.where(valid, m, 0.0)
        diff = jnp.where(valid, y - g, 0.0)
    else:
        diff = y - g

    loss = diff * m                       # == y*m - g*m
    lm = loss * m
    sm_ref[...] += jnp.sum(m, axis=-1)            # (bn, C)
    sl_ref[...] += jnp.sum(loss, axis=-1)         # (bn, C)
    slm_ref[...] += jnp.sum(lm, axis=-1)          # (bn, C)
    sl2m_ref[...] += jnp.sum(loss * lm, axis=-1)  # (bn, C)  loss^2 * m

    @pl.when(sb == pl.num_programs(1) - 1)
    def _():
        s_m = sm_ref[...]                                 # (bn, C)
        predot = jnp.sum(s_m, axis=-1, keepdims=True)     # (bn, 1): sum over C,H,W
        inv_predot = pl.reciprocal(predot, approx=False)  # precise; finalize is tiny
        mean = sl_ref[...] * inv_predot                   # (bn, C)
        var_num = sl2m_ref[...] - 2.0 * mean * slm_ref[...] + mean * mean * s_m
        # Exact value is a sum of squares (>= 0); clamp fp cancellation.
        var_num = jnp.maximum(var_num, 0.0)
        o_ref[...] = jnp.sqrt(var_num * inv_predot)[None].astype(o_ref.dtype)


def std_pallas(y_hat, g_truth, mask, *, vmem_input_budget=None):
    """Returns per-channel std, shape (C,), matching Std.forward."""
    N, C, H, W = y_hat.shape
    HW = H * W

    # ---- generation-aware VMEM budgeting ---------------------------------
    try:
        vmem_cap = int(pltpu.get_tpu_info().vmem_capacity_bytes)
    except Exception:                      # pragma: no cover - defensive
        vmem_cap = 64 * 1024 * 1024        # conservative (v7x per-TC VMEM)
    if vmem_input_budget is None:
        # Budget for 3 inputs x 2 pipeline buffers (sublane padding included
        # below): 16 MiB on 128 MiB parts (v5e/v6e), 8 MiB on v7x (64 MiB).
        vmem_input_budget = max(4 << 20, min(16 << 20, vmem_cap // 8))

    # Per (bn=1, t=1) VMEM bytes of the three input blocks, INCLUDING the
    # sublane padding of the channel axis (f32 pads C to 8, bf16 to 16,
    # int8/uint8 to 32) so small C does not silently blow the budget.
    def _c_bytes(dtype):
        it = jnp.dtype(dtype).itemsize
        pack = max(8, 32 // it)
        return _round_up(C, pack) * it

    bytes_per_bn_t = sum(_c_bytes(x.dtype) for x in (y_hat, g_truth, mask))
    max_bn_t = max(128, vmem_input_budget // (2 * bytes_per_bn_t))

    hw_lanes = _round_up(HW, 128)          # lane-granular spatial extent

    if hw_lanes <= max_bn_t:
        # Whole spatial extent fits in one block: pack batch rows per grid
        # step to amortize the ~0.35 us per-step overhead on small problems.
        t = hw_lanes
        bn = max(1, min(N, max_bn_t // hw_lanes))
        if N >= 2:
            # Keep >= 2 blocks on the parallel batch axis (v7x megacore).
            bn = min(bn, _cdiv(N, 2))
    else:
        # Large images: tile the spatial axis; balance the tile size across
        # blocks so tail waste stays below 128 lanes per block.
        bn = 1
        t_max = max(128, (max_bn_t // 128) * 128)
        n_blocks = _cdiv(hw_lanes, t_max)
        t = _round_up(_cdiv(hw_lanes, n_blocks), 128)

    n_sb = _cdiv(HW, t)
    n_nb = _cdiv(N, bn)                    # ragged last batch block allowed

    # Flatten spatial dims; contiguous reshape is free (no pad pass, no copy).
    y_r = y_hat.reshape(N, C, HW)
    g_r = g_truth.reshape(N, C, HW)
    m_r = mask.reshape(N, C, HW)

    in_spec = pl.BlockSpec((bn, C, t), lambda nb, sb: (nb, 0, sb))
    out_spec = pl.BlockSpec((1, bn, C), lambda nb, sb: (nb, 0, 0))

    # VMEM actually needed: inputs (double-buffered, sublane-padded) + the
    # four (bn, C) stats scratches + the (1, bn, C) output buffers.
    pad_bn, pad_c = _round_up(bn, 8), _round_up(C, 128)
    vmem_needed = (2 * bn * t * bytes_per_bn_t
                   + 4 * pad_bn * pad_c * 4
                   + 2 * pad_bn * pad_c * 4)
    vmem_limit = max(32 << 20, vmem_needed + (4 << 20))
    vmem_limit = min(vmem_limit, vmem_cap * 3 // 4)
    vmem_limit = max(vmem_limit, vmem_needed + (1 << 20))

    in_bytes = sum(int(x.size) * x.dtype.itemsize for x in (y_r, g_r, m_r))
    cost = pl.CostEstimate(
        flops=8 * N * C * HW,
        transcendentals=2 * N * C,
        bytes_accessed=in_bytes + n_nb * bn * C * 4,
    )

    kernel = functools.partial(_std_kernel, hw=HW, t=t)
    out3d = pl.pallas_call(
        kernel,
        out_shape=jax.ShapeDtypeStruct((n_nb, bn, C), jnp.float32),
        grid_spec=pltpu.PrefetchScalarGridSpec(
            num_scalar_prefetch=0,
            grid=(n_nb, n_sb),
            in_specs=[in_spec, in_spec, in_spec],
            out_specs=out_spec,
            scratch_shapes=[
                pltpu.VMEM((bn, C), jnp.float32),   # sum(mask)
                pltpu.VMEM((bn, C), jnp.float32),   # sum(loss)
                pltpu.VMEM((bn, C), jnp.float32),   # sum(loss*mask)
                pltpu.VMEM((bn, C), jnp.float32),   # sum(loss^2*mask)
            ],
        ),
        compiler_params=pltpu.CompilerParams(
            dimension_semantics=("parallel", "arbitrary"),
            vmem_limit_bytes=int(vmem_limit),
        ),
        cost_estimate=cost,
    )(y_r, g_r, m_r)

    # Drop phantom rows of a ragged last batch block, then torch.mean(dim=0)
    # and .view(C) — tiny (N, C) op, done in plain JAX.
    per_batch = out3d.reshape(n_nb * bn, C)[:N]
    return jnp.mean(per_batch, axis=0)


def std_reference(y_hat, g_truth, mask):
    """Pure-JAX reference mirroring the PyTorch forward exactly."""
    y = y_hat * mask
    g = g_truth * mask
    predot = jnp.sum(mask, axis=(1, 2, 3)).reshape(mask.shape[0], 1, 1, 1)
    loss = y - g
    mean = jnp.sum(loss, axis=(2, 3), keepdims=True) / predot
    para1 = ((loss - mean) ** 2) * mask
    para2 = jnp.sqrt(jnp.sum(para1, axis=(2, 3), keepdims=True) / predot)
    return jnp.mean(para2, axis=0).reshape(y_hat.shape[1])


if __name__ == "__main__":
    key = jax.random.PRNGKey(0)
    k1, k2, k3, k4, k5, k6 = jax.random.split(key, 6)

    # Case 1: lane-aligned spatial extent (HW = 256), f32 everywhere.
    N, C, H, W = 2, 4, 16, 16
    y1 = jax.random.normal(k1, (N, C, H, W), dtype=jnp.float32)
    g1 = jax.random.normal(k2, (N, C, H, W), dtype=jnp.float32)
    m1 = (jax.random.uniform(k3, (N, C, H, W)) > 0.5).astype(jnp.float32)

    out1 = jax.block_until_ready(std_pallas(y1, g1, m1))
    ref1 = std_reference(y1, g1, m1)
    assert out1.shape == (C,)
    assert jnp.allclose(out1, ref1, atol=1e-5, rtol=1e-4), (out1, ref1)

    # Case 2: ragged spatial tail (HW = 225) and ragged batch block (N = 3)
    # — exercises the in-kernel tail masking (no wrapper pad pass).
    N2, C2, H2, W2 = 3, 4, 15, 15
    y2 = jax.random.normal(k4, (N2, C2, H2, W2), dtype=jnp.float32)
    g2 = jax.random.normal(k5, (N2, C2, H2, W2), dtype=jnp.float32)
    m2 = (jax.random.uniform(k6, (N2, C2, H2, W2)) > 0.5).astype(jnp.float32)

    out2 = jax.block_until_ready(std_pallas(y2, g2, m2))
    ref2 = std_reference(y2, g2, m2)
    assert jnp.allclose(out2, ref2, atol=1e-5, rtol=1e-4), (out2, ref2)

    # Case 3: narrow mask dtype (bf16 is exact for a 0/1 mask) — cuts the
    # mask's share of the HBM stream roughly in half.
    out3 = jax.block_until_ready(std_pallas(y1, g1, m1.astype(jnp.bfloat16)))
    assert jnp.allclose(out3, ref1, atol=1e-5, rtol=1e-4), (out3, ref1)

    print("KERNEL_OK")
</pallas_src>

<mosaic_0001>
module attributes {stable_mosaic.version = 11 : i64} {
  func.func @_std_kernel(%arg0: i32, %arg1: i32, %arg2: memref<1x4x256xf32, #tpu.memory_space<vmem>>, %arg3: memref<1x4x256xf32, #tpu.memory_space<vmem>>, %arg4: memref<1x4x256xf32, #tpu.memory_space<vmem>>, %arg5: memref<1x1x4xf32, #tpu.memory_space<vmem>>, %arg6: memref<1x4xf32, #tpu.memory_space<vmem>>, %arg7: memref<1x4xf32, #tpu.memory_space<vmem>>, %arg8: memref<1x4xf32, #tpu.memory_space<vmem>>, %arg9: memref<1x4xf32, #tpu.memory_space<vmem>>) attributes {dimension_semantics = [#tpu.dimension_semantics<parallel>, #tpu.dimension_semantics<arbitrary>], iteration_bounds = array<i64: 2, 1>, scalar_prefetch = 0 : i64, scratch_operands = 4 : i64, tpu.core_type = #tpu.core_type<tc>, window_params = [{transform_indices = @transform_0, window_bounds = array<i64: 1, 4, 256>}, {transform_indices = @transform_1, window_bounds = array<i64: 1, 4, 256>}, {transform_indices = @transform_2, window_bounds = array<i64: 1, 4, 256>}, {transform_indices = @transform_3, window_bounds = array<i64: 1, 1, 4>}]} {
    %c0_i32 = arith.constant 0 : i32
    %0 = arith.cmpi eq, %arg1, %c0_i32 : i32
    %1 = arith.extui %0 : i1 to i32
    %c0_i32_0 = arith.constant 0 : i32
    %2 = arith.cmpi ne, %1, %c0_i32_0 : i32
    scf.if %2 {
      %cst_30 = arith.constant 0.000000e+00 : f32
      %29 = vector.broadcast %cst_30 : f32 to vector<1x4xf32>
      %c0_31 = arith.constant 0 : index
      %c0_32 = arith.constant 0 : index
      %30 = vector.load %arg6[%c0_31, %c0_32] : memref<1x4xf32, #tpu.memory_space<vmem>>, vector<1x4xf32>
      tpu.vector_store %arg6[%c0_31, %c0_32], %29 {strides = array<i32>} : memref<1x4xf32, #tpu.memory_space<vmem>>, vector<1x4xf32>,
      %cst_33 = arith.constant 0.000000e+00 : f32
      %31 = vector.broadcast %cst_33 : f32 to vector<1x4xf32>
      %c0_34 = arith.constant 0 : index
      %c0_35 = arith.constant 0 : index
      %32 = vector.load %arg7[%c0_34, %c0_35] : memref<1x4xf32, #tpu.memory_space<vmem>>, vector<1x4xf32>
      tpu.vector_store %arg7[%c0_34, %c0_35], %31 {strides = array<i32>} : memref<1x4xf32, #tpu.memory_space<vmem>>, vector<1x4xf32>,
      %cst_36 = arith.constant 0.000000e+00 : f32
      %33 = vector.broadcast %cst_36 : f32 to vector<1x4xf32>
      %c0_37 = arith.constant 0 : index
      %c0_38 = arith.constant 0 : index
      %34 = vector.load %arg8[%c0_37, %c0_38] : memref<1x4xf32, #tpu.memory_space<vmem>>, vector<1x4xf32>
      tpu.vector_store %arg8[%c0_37, %c0_38], %33 {strides = array<i32>} : memref<1x4xf32, #tpu.memory_space<vmem>>, vector<1x4xf32>,
      %cst_39 = arith.constant 0.000000e+00 : f32
      %35 = vector.broadcast %cst_39 : f32 to vector<1x4xf32>
      %c0_40 = arith.constant 0 : index
      %c0_41 = arith.constant 0 : index
      %36 = vector.load %arg9[%c0_40, %c0_41] : memref<1x4xf32, #tpu.memory_space<vmem>>, vector<1x4xf32>
      tpu.vector_store %arg9[%c0_40, %c0_41], %35 {strides = array<i32>} : memref<1x4xf32, #tpu.memory_space<vmem>>, vector<1x4xf32>,
    } else {
    }
    %c0 = arith.constant 0 : index
    %c0_1 = arith.constant 0 : index
    %c0_2 = arith.constant 0 : index
    %3 = vector.load %arg2[%c0, %c0_1, %c0_2] : memref<1x4x256xf32, #tpu.memory_space<vmem>>, vector<1x4x256xf32>
    %c0_3 = arith.constant 0 : index
    %c0_4 = arith.constant 0 : index
    %c0_5 = arith.constant 0 : index
    %4 = vector.load %arg3[%c0_3, %c0_4, %c0_5] : memref<1x4x256xf32, #tpu.memory_space<vmem>>, vector<1x4x256xf32>
    %c0_6 = arith.constant 0 : index
    %c0_7 = arith.constant 0 : index
    %c0_8 = arith.constant 0 : index
    %5 = vector.load %arg4[%c0_6, %c0_7, %c0_8] : memref<1x4x256xf32, #tpu.memory_space<vmem>>, vector<1x4x256xf32>
    %6 = arith.subf %3, %4 : vector<1x4x256xf32>
    %7 = arith.mulf %6, %5 : vector<1x4x256xf32>
    %8 = arith.mulf %7, %5 : vector<1x4x256xf32>
    %c0_9 = arith.constant 0 : index
    %c0_10 = arith.constant 0 : index
    %9 = vector.load %arg6[%c0_9, %c0_10] : memref<1x4xf32, #tpu.memory_space<vmem>>, vector<1x4xf32>
    %cst = arith.constant dense<0.000000e+00> : vector<1x4xf32>
    %10 = vector.multi_reduction <add>, %5, %cst [2] : vector<1x4x256xf32> to vector<1x4xf32>
    %11 = arith.addf %9, %10 : vector<1x4xf32>
    %c0_11 = arith.constant 0 : index
    %c0_12 = arith.constant 0 : index
    %12 = vector.load %arg6[%c0_11, %c0_12] : memref<1x4xf32, #tpu.memory_space<vmem>>, vector<1x4xf32>
    tpu.vector_store %arg6[%c0_11, %c0_12], %11 {strides = array<i32>} : memref<1x4xf32, #tpu.memory_space<vmem>>, vector<1x4xf32>,
    %c0_13 = arith.constant 0 : index
    %c0_14 = arith.constant 0 : index
    %13 = vector.load %arg7[%c0_13, %c0_14] : memref<1x4xf32, #tpu.memory_space<vmem>>, vector<1x4xf32>
    %cst_15 = arith.constant dense<0.000000e+00> : vector<1x4xf32>
    %14 = vector.multi_reduction <add>, %7, %cst_15 [2] : vector<1x4x256xf32> to vector<1x4xf32>
    %15 = arith.addf %13, %14 : vector<1x4xf32>
    %c0_16 = arith.constant 0 : index
    %c0_17 = arith.constant 0 : index
    %16 = vector.load %arg7[%c0_16, %c0_17] : memref<1x4xf32, #tpu.memory_space<vmem>>, vector<1x4xf32>
    tpu.vector_store %arg7[%c0_16, %c0_17], %15 {strides = array<i32>} : memref<1x4xf32, #tpu.memory_space<vmem>>, vector<1x4xf32>,
    %c0_18 = arith.constant 0 : index
    %c0_19 = arith.constant 0 : index
    %17 = vector.load %arg8[%c0_18, %c0_19] : memref<1x4xf32, #tpu.memory_space<vmem>>, vector<1x4xf32>
    %cst_20 = arith.constant dense<0.000000e+00> : vector<1x4xf32>
    %18 = vector.multi_reduction <add>, %8, %cst_20 [2] : vector<1x4x256xf32> to vector<1x4xf32>
    %19 = arith.addf %17, %18 : vector<1x4xf32>
    %c0_21 = arith.constant 0 : index
    %c0_22 = arith.constant 0 : index
    %20 = vector.load %arg8[%c0_21, %c0_22] : memref<1x4xf32, #tpu.memory_space<vmem>>, vector<1x4xf32>
    tpu.vector_store %arg8[%c0_21, %c0_22], %19 {strides = array<i32>} : memref<1x4xf32, #tpu.memory_space<vmem>>, vector<1x4xf32>,
    %c0_23 = arith.constant 0 : index
    %c0_24 = arith.constant 0 : index
    %21 = vector.load %arg9[%c0_23, %c0_24] : memref<1x4xf32, #tpu.memory_space<vmem>>, vector<1x4xf32>
    %22 = arith.mulf %7, %8 : vector<1x4x256xf32>
    %cst_25 = arith.constant dense<0.000000e+00> : vector<1x4xf32>
    %23 = vector.multi_reduction <add>, %22, %cst_25 [2] : vector<1x4x256xf32> to vector<1x4xf32>
    %24 = arith.addf %21, %23 : vector<1x4xf32>
    %c0_26 = arith.constant 0 : index
    %c0_27 = arith.constant 0 : index
    %25 = vector.load %arg9[%c0_26, %c0_27] : memref<1x4xf32, #tpu.memory_space<vmem>>, vector<1x4xf32>
    tpu.vector_store %arg9[%c0_26, %c0_27], %24 {strides = array<i32>} : memref<1x4xf32, #tpu.memory_space<vmem>>, vector<1x4xf32>,
    %c0_i32_28 = arith.constant 0 : i32
    %26 = arith.cmpi eq, %arg1, %c0_i32_28 : i32
    %27 = arith.extui %26 : i1 to i32
    %c0_i32_29 = arith.constant 0 : i32
    %28 = arith.cmpi ne, %27, %c0_i32_29 : i32
    scf.if %28 {
      %c0_30 = arith.constant 0 : index
      %c0_31 = arith.constant 0 : index
      %29 = vector.load %arg6[%c0_30, %c0_31] : memref<1x4xf32, #tpu.memory_space<vmem>>, vector<1x4xf32>
      %cst_32 = arith.constant dense<0.000000e+00> : vector<1xf32>
      %30 = vector.multi_reduction <add>, %29, %cst_32 [1] : vector<1x4xf32> to vector<1xf32>
      %31 = vector.shape_cast %30 : vector<1xf32> to vector<1x1xf32>
      %32 = tpu.reciprocal %31 : vector<1x1xf32> -> vector<1x1xf32>
      %c0_33 = arith.constant 0 : index
      %c0_34 = arith.constant 0 : index
      %33 = vector.load %arg7[%c0_33, %c0_34] : memref<1x4xf32, #tpu.memory_space<vmem>>, vector<1x4xf32>
      %34 = vector.broadcast %32 : vector<1x1xf32> to vector<1x4xf32>
      %35 = arith.mulf %33, %34 : vector<1x4xf32>
      %c0_35 = arith.constant 0 : index
      %c0_36 = arith.constant 0 : index
      %36 = vector.load %arg9[%c0_35, %c0_36] : memref<1x4xf32, #tpu.memory_space<vmem>>, vector<1x4xf32>
      %cst_37 = arith.constant 2.000000e+00 : f32
      %37 = vector.broadcast %cst_37 : f32 to vector<1x4xf32>
      %38 = arith.mulf %37, %35 : vector<1x4xf32>
      %c0_38 = arith.constant 0 : index
      %c0_39 = arith.constant 0 : index
      %39 = vector.load %arg8[%c0_38, %c0_39] : memref<1x4xf32, #tpu.memory_space<vmem>>, vector<1x4xf32>
      %40 = arith.mulf %38, %39 : vector<1x4xf32>
      %41 = arith.subf %36, %40 : vector<1x4xf32>
      %42 = arith.mulf %35, %35 : vector<1x4xf32>
      %43 = arith.mulf %42, %29 : vector<1x4xf32>
      %44 = arith.addf %41, %43 : vector<1x4xf32>
      %cst_40 = arith.constant 0.000000e+00 : f32
      %45 = vector.broadcast %cst_40 : f32 to vector<1x4xf32>
      %46 = arith.maximumf %44, %45 : vector<1x4xf32>
      %47 = vector.broadcast %32 : vector<1x1xf32> to vector<1x4xf32>
      %48 = arith.mulf %46, %47 : vector<1x4xf32>
      %49 = math.sqrt %48 : vector<1x4xf32>
      %50 = vector.shape_cast %49 : vector<1x4xf32> to vector<1x1x4xf32>
      %c0_41 = arith.constant 0 : index
      %c0_42 = arith.constant 0 : index
      %c0_43 = arith.constant 0 : index
      %51 = vector.load %arg5[%c0_41, %c0_42, %c0_43] : memref<1x1x4xf32, #tpu.memory_space<vmem>>, vector<1x1x4xf32>
      tpu.vector_store %arg5[%c0_41, %c0_42, %c0_43], %50 {strides = array<i32>} : memref<1x1x4xf32, #tpu.memory_space<vmem>>, vector<1x1x4xf32>,
    } else {
    }
    return
  }
  func.func @transform_0(%arg0: i32, %arg1: i32) -> (i32, i32, i32) {
    %c0_i32 = arith.constant 0 : i32
    %c0_i32_0 = arith.constant 0 : i32
    return %arg0, %c0_i32, %arg1 : i32, i32, i32
  }
  func.func @transform_1(%arg0: i32, %arg1: i32) -> (i32, i32, i32) {
    %c0_i32 = arith.constant 0 : i32
    %c0_i32_0 = arith.constant 0 : i32
    return %arg0, %c0_i32, %arg1 : i32, i32, i32
  }
  func.func @transform_2(%arg0: i32, %arg1: i32) -> (i32, i32, i32) {
    %c0_i32 = arith.constant 0 : i32
    %c0_i32_0 = arith.constant 0 : i32
    return %arg0, %c0_i32, %arg1 : i32, i32, i32
  }
  func.func @transform_3(%arg0: i32, %arg1: i32) -> (i32, i32, i32) {
    %c0_i32 = arith.constant 0 : i32
    %c0_i32_0 = arith.constant 0 : i32
    %c0_i32_1 = arith.constant 0 : i32
    return %arg0, %c0_i32, %c0_i32_0 : i32, i32, i32
  }
}

</mosaic_0001>

<llo_original>
// kernel: tpu_custom_call.1
$region0: #{tpu_custom_call.1}
  #allocation0 [shape = 'u32[]', space=smem, size = 0x4, offset = 0x4, fixed_abs, tag = 'smem constant byte address 0x4 - core index']
  #allocation1 [shape = 'u32[144,128]{1,0:T(1,128)}', space=vmem, size = 0x12000, scoped, tag = 'internal scratch']
  #allocation2 [shape = 'f32[1,4]{1,0:T(1,128)}', space=vmem, size = 0x200, scoped, tag = 'scratch operand']
  #allocation3 [shape = 'f32[1,4]{1,0:T(1,128)}', space=vmem, size = 0x200, scoped, tag = 'scratch operand']
  #allocation4 [shape = 'f32[1,4]{1,0:T(1,128)}', space=vmem, size = 0x200, scoped, tag = 'scratch operand']
  #allocation5 [shape = 'f32[1,4]{1,0:T(1,128)}', space=vmem, size = 0x200, scoped, tag = 'scratch operand']
  %s0 = inlined_call_operand.hbm [shape: f32[2,4,256], index: 0, kind: input, shape index: {}]
  %s1 = inlined_call_operand.hbm [shape: f32[2,4,256], index: 1, kind: input, shape index: {}]
  %s2 = inlined_call_operand.hbm [shape: f32[2,4,256], index: 2, kind: input, shape index: {}]
  %s3 = inlined_call_operand.hbm [shape: f32[2,1,4], index: 3, kind: output, shape index: {}]
  %s4 = sld [smem:[#allocation0]]
  $region65: #{tpu_custom_call.1} parent=0
    _
  %s6 = ssub.s32 1, %s4
  %s7 = scalar_select 0, %s6, %s4
  $region1: #{tpu_custom_call.1} parent=0
    #allocation6 [shape = 'u8[8192]{0}', space=vmem, size = 0x2000, scoped, tag = 'input window, operand 0']
    #allocation7 [shape = 's32[2]{0}', space=sflag, size = 0x8, scoped, tag = 'scoped memory for tpu_custom_call.1']
    #allocation8 [shape = 's32[2]{0}', space=sflag, size = 0x8, scoped, tag = 'scoped memory for tpu_custom_call.1']
    #allocation9 [shape = 'u8[8192]{0}', space=vmem, size = 0x2000, scoped, tag = 'input window, operand 1']
    #allocation10 [shape = 's32[2]{0}', space=sflag, size = 0x8, scoped, tag = 'scoped memory for tpu_custom_call.1']
    #allocation11 [shape = 'u8[8192]{0}', space=vmem, size = 0x2000, scoped, tag = 'input window, operand 2']
    #allocation12 [shape = 'u8[1024]{0}', space=vmem, size = 0x400, scoped, tag = 'output window, operand 0']
    %8 = vsyncpa [#allocation7], 0
    %s9 = scalar_lea.sflag [#allocation7], 1
    %10 = vsyncpa %s9, 0
    %11 = vsyncpa [#allocation10], 0
    %s12 = scalar_lea.sflag [#allocation10], 1
    %13 = vsyncpa %s12, 0
    %14 = vsyncpa [#allocation8], 0
    %s15 = scalar_lea.sflag [#allocation8], 1
    %16 = vsyncpa %s15, 0
    loop: start=0, step=1, limit=4
    $region2: #{tpu_custom_call.1} parent=1 // loop_pre_header
      _
    $region3: #{tpu_custom_call.1} parent=1 // loop_header
      %s18 = sphi 0, %s22
      %p19 = scmp.ge.s32.totalorder %s18, 4
      %s25 = sphi 0, %s37
      %s26 = sphi 0, %s33
      %s27 = sphi 0, %s25
      %s28 = sphi 0, %s26
      %s29 = sphi 0, %s27
      %s30 = sphi 0, %s28
      %s42 = sphi 0, %s44
      %s45 = sphi 0, %s42
      %s46 = sphi 0, %s45
      %s62 = sphi 0, %s46
      %s70 = sphi 0, %s72
      %s73 = sphi 0, %s70
      %s74 = sphi 0, %s73
      %s90 = sphi 0, %s74
      %s98 = sphi 0, %s100
      %s101 = sphi 0, %s98
      %s102 = sphi 0, %s101
      %s118 = sphi 0, %s102
      %s124 = sphi 0, %s126
      %s127 = sphi 0, %s124
      %s128 = sphi 0, %s127
      %s144 = sphi 0, %s128
    $region4: #{tpu_custom_call.1} parent=1 // loop_header_branch
      %21 = sbr.rel (%p19) target = $region8
    $region5: #{tpu_custom_call.1} parent=1 // loop_body
      %s23 = ssub.s32 %s18, 1
      %s24 = ssub.s32 %s18, 2
      %s31 = sadd.s32 1, %s26
      %p32 = scmp.ge.s32.totalorder %s31, 1
      %s33 = scalar_select %p32, 0, %s31
      %s34 = sadd.s32 1, %s25
      %s35 = scalar_select %p32, %s34, %s25
      %p36 = scmp.ge.s32.totalorder %s35, 2
      %s37 = scalar_select %p36, 0, %s35
      %s38 = ssub.s32 %s25, %s37
      %s39 = ssub.s32 %s26, %s33
      %s40 = sor.u32 %s38, %s39
      %p41 = scmp.eq.s32.totalorder %s40, 0
      %s43 = sadd.s32 %s42, 1
      %s44 = scalar_select %p41, %s42, %s43
      %p47 = pneg %p41
      %p48 = scmp.eq.s32.totalorder %s18, 1
      %p49 = por %p47, %p48
      %p50 = scmp.ne.s32.totalorder %s42, %s45
      %p51 = scmp.eq.s32.totalorder %s18, 0
      %p52 = por %p50, %p51
      %p53 = scmp.ne.s32.totalorder %s42, %s45
      %p54 = scmp.eq.s32.totalorder %s23, 1
      %p55 = por %p53, %p54
      %p56 = scmp.ne.s32.totalorder %s45, %s46
      %p57 = scmp.eq.s32.totalorder %s23, 0
      %p58 = por %p56, %p57
      %p59 = scmp.ne.s32.totalorder %s45, %s46
      %p60 = scmp.eq.s32.totalorder %s24, 1
      %p61 = por %p59, %p60
      %p63 = scmp.ne.s32.totalorder %s46, %s62
      %p64 = scmp.eq.s32.totalorder %s24, 0
      %p65 = por %p63, %p64
      %s66 = ssub.s32 %s25, %s37
      %s67 = ssub.s32 %s26, %s33
      %s68 = sor.u32 %s66, %s67
      %p69 = scmp.eq.s32.totalorder %s68, 0
      %s71 = sadd.s32 %s70, 1
      %s72 = scalar_select %p69, %s70, %s71
      %p75 = pneg %p69
      %p76 = scmp.eq.s32.totalorder %s18, 1
      %p77 = por %p75, %p76
      %p78 = scmp.ne.s32.totalorder %s70, %s73
      %p79 = scmp.eq.s32.totalorder %s18, 0
      %p80 = por %p78, %p79
      %p81 = scmp.ne.s32.totalorder %s70, %s73
      %p82 = scmp.eq.s32.totalorder %s23, 1
      %p83 = por %p81, %p82
      %p84 = scmp.ne.s32.totalorder %s73, %s74
      %p85 = scmp.eq.s32.totalorder %s23, 0
      %p86 = por %p84, %p85
      %p87 = scmp.ne.s32.totalorder %s73, %s74
      %p88 = scmp.eq.s32.totalorder %s24, 1
      %p89 = por %p87, %p88
      %p91 = scmp.ne.s32.totalorder %s74, %s90
      %p92 = scmp.eq.s32.totalorder %s24, 0
      %p93 = por %p91, %p92
      %s94 = ssub.s32 %s25, %s37
      %s95 = ssub.s32 %s26, %s33
      %s96 = sor.u32 %s94, %s95
      %p97 = scmp.eq.s32.totalorder %s96, 0
      %s99 = sadd.s32 %s98, 1
      %s100 = scalar_select %p97, %s98, %s99
      %p103 = pneg %p97
      %p104 = scmp.eq.s32.totalorder %s18, 1
      %p105 = por %p103, %p104
      %p106 = scmp.ne.s32.totalorder %s98, %s101
      %p107 = scmp.eq.s32.totalorder %s18, 0
      %p108 = por %p106, %p107
      %p109 = scmp.ne.s32.totalorder %s98, %s101
      %p110 = scmp.eq.s32.totalorder %s23, 1
      %p111 = por %p109, %p110
      %p112 = scmp.ne.s32.totalorder %s101, %s102
      %p113 = scmp.eq.s32.totalorder %s23, 0
      %p114 = por %p112, %p113
      %p115 = scmp.ne.s32.totalorder %s101, %s102
      %p116 = scmp.eq.s32.totalorder %s24, 1
      %p117 = por %p115, %p116
      %p119 = scmp.ne.s32.totalorder %s102, %s118
      %p120 = scmp.eq.s32.totalorder %s24, 0
      %p121 = por %p119, %p120
      %s122 = ssub.s32 %s25, %s37
      %p123 = scmp.eq.s32.totalorder %s122, 0
      %s125 = sadd.s32 %s124, 1
      %s126 = scalar_select %p123, %s124, %s125
      %p129 = pneg %p123
      %p130 = scmp.eq.s32.totalorder %s18, 1
      %p131 = por %p129, %p130
      %p132 = scmp.ne.s32.totalorder %s124, %s127
      %p133 = scmp.eq.s32.totalorder %s18, 0
      %p134 = por %p132, %p133
      %p135 = scmp.ne.s32.totalorder %s124, %s127
      %p136 = scmp.eq.s32.totalorder %s23, 1
      %p137 = por %p135, %p136
      %p138 = scmp.ne.s32.totalorder %s127, %s128
      %p139 = scmp.eq.s32.totalorder %s23, 0
      %p140 = por %p138, %p139
      %p141 = scmp.ne.s32.totalorder %s127, %s128
      %p142 = scmp.eq.s32.totalorder %s24, 1
      %p143 = por %p141, %p142
      %p145 = scmp.ne.s32.totalorder %s128, %s144
      %p146 = scmp.eq.s32.totalorder %s24, 0
      %p147 = por %p145, %p146
      %p148 = scmp.le.s32.totalorder 1, %s18
      %p149 = scmp.lt.s32.totalorder %s18, 3
      %p150 = pnand %p148, %p149
      %p151 = pneg %p150
      // Predicated region
      $region9: #{tpu_custom_call.1} parent=5 // pred_check
        _
      $region10: #{tpu_custom_call.1} parent=5 // pred_check_branch
        %153 = sbr.rel (%p150) target = $region12
      $region11: #{tpu_custom_call.1} parent=5 // pred_region
        %s154 = ssub.s32 %s18, 1
      $region12: #{tpu_custom_call.1} parent=5 // pred_fallthru
        _
      %p155 = scmp.lt.s32.totalorder %s18, 2
      // Predicated region
      $region13: #{tpu_custom_call.1} parent=5 // pred_check
        %p156 = pneg %p155
      $region14: #{tpu_custom_call.1} parent=5 // pred_check_branch
        %158 = sbr.rel (%p156) target = $region16
      $region15: #{tpu_custom_call.1} parent=5 // pred_region
        // Predicated region
        $region17: #{tpu_custom_call.1} parent=15 // pred_check
          %p159 = pneg %p52
        $region18: #{tpu_custom_call.1} parent=15 // pred_check_branch
          %161 = sbr.rel (%p159) target = $region20
        $region19: #{tpu_custom_call.1} parent=15 // pred_region
          %s162 = sand.u32 %s42, 1
          %s163 = scalar_lea.sflag [#allocation7], %s162
          %s164 = sand.u32 %s42, 1
          %s165 = smul.addr %s164, 8
          %s166 = scalar_lea.vmem [#allocation6], %s165
          %s167 = smul.u32 2, %s26
          %s169 = ssub.s32 128, 128
          %170 = vsyncadd %s163, %s169
          %s171 = smul.addr %s25, 2
          %s172 = sadd.s32 %s167, %s171
          %s173 = smul.addr %s172, 64
          %s174 = scalar_lea.hbm %s0, %s173
          %s176 = sshll.u32 %s166, 4
          %s177 = int_to_ptr.vmem [resolvable:$true] %s176
          %179 = dma.hbm_to_vmem [thread:$0]  %s174, 128, %s177, %s163
        $region20: #{tpu_custom_call.1} parent=15 // pred_fallthru
          _
        // Predicated region
        $region21: #{tpu_custom_call.1} parent=15 // pred_check
          %p180 = pneg %p80
        $region22: #{tpu_custom_call.1} parent=15 // pred_check_branch
          %182 = sbr.rel (%p180) target = $region24
        $region23: #{tpu_custom_call.1} parent=15 // pred_region
          %s183 = sand.u32 %s18, 1
          %s184 = scalar_lea.sflag [#allocation10], %s183
          %s185 = sand.u32 %s70, 1
          %s186 = smul.addr %s185, 8
          %s187 = scalar_lea.vmem [#allocation9], %s186
          %s188 = smul.u32 2, %s26
          %s190 = ssub.s32 128, 128
          %191 = vsyncadd %s184, %s190
          %s192 = smul.addr %s25, 2
          %s193 = sadd.s32 %s188, %s192
          %s194 = smul.addr %s193, 64
          %s195 = scalar_lea.hbm %s1, %s194
          %s197 = sshll.u32 %s187, 4
          %s198 = int_to_ptr.vmem [resolvable:$true] %s197
          %200 = dma.hbm_to_vmem [thread:$0]  %s195, 128, %s198, %s184
        $region24: #{tpu_custom_call.1} parent=15 // pred_fallthru
          _
        // Predicated region
        $region25: #{tpu_custom_call.1} parent=15 // pred_check
          %p201 = pneg %p108
        $region26: #{tpu_custom_call.1} parent=15 // pred_check_branch
          %203 = sbr.rel (%p201) target = $region28
        $region27: #{tpu_custom_call.1} parent=15 // pred_region
          %s204 = sand.u32 %s18, 1
          %s205 = scalar_lea.sflag [#allocation10], %s204
          %s206 = sand.u32 %s98, 1
          %s207 = smul.addr %s206, 8
          %s208 = scalar_lea.vmem [#allocation11], %s207
          %s209 = smul.u32 2, %s26
          %s211 = ssub.s32 128, 128
          %212 = vsyncadd %s205, %s211
          %s213 = smul.addr %s25, 2
          %s214 = sadd.s32 %s209, %s213
          %s215 = smul.addr %s214, 64
          %s216 = scalar_lea.hbm %s2, %s215
          %s218 = sshll.u32 %s208, 4
          %s219 = int_to_ptr.vmem [resolvable:$true] %s218
          %221 = dma.hbm_to_vmem [thread:$0]  %s216, 128, %s219, %s205
        $region28: #{tpu_custom_call.1} parent=15 // pred_fallthru
          _
      $region16: #{tpu_custom_call.1} parent=5 // pred_fallthru
        _
      %p222 = scmp.le.s32.totalorder 1, %s18
      %p223 = scmp.lt.s32.totalorder %s18, 3
      %p224 = pnand %p222, %p223
      %p225 = pneg %p224
      // Predicated region
      $region29: #{tpu_custom_call.1} parent=5 // pred_check
        _
      $region30: #{tpu_custom_call.1} parent=5 // pred_check_branch
        %227 = sbr.rel (%p224) target = $region32
      $region31: #{tpu_custom_call.1} parent=5 // pred_region
        %s228 = ssub.s32 %s18, 1
        %s229 = sand.u32 %s45, 1
        %s230 = scalar_lea.sflag [#allocation7], %s229
        %s231 = sand.u32 %s45, 1
        %s232 = smul.addr %s231, 8
        %s233 = scalar_lea.vmem [#allocation6], %s232
        // Predicated region
        $region33: #{tpu_custom_call.1} parent=31 // pred_check
          %p234 = pneg %p58
        $region34: #{tpu_custom_call.1} parent=31 // pred_check_branch
          %236 = sbr.rel (%p234) target = $region36
        $region35: #{tpu_custom_call.1} parent=31 // pred_region
          %237 = dma.done %s230, 128
        $region36: #{tpu_custom_call.1} parent=31 // pred_fallthru
          _
        %s238 = sand.u32 %s23, 1
        %s239 = scalar_lea.sflag [#allocation10], %s238
        %s240 = sand.u32 %s73, 1
        %s241 = smul.addr %s240, 8
        %s242 = scalar_lea.vmem [#allocation9], %s241
        // Predicated region
        $region37: #{tpu_custom_call.1} parent=31 // pred_check
          %p243 = pneg %p86
        $region38: #{tpu_custom_call.1} parent=31 // pred_check_branch
          %245 = sbr.rel (%p243) target = $region40
        $region39: #{tpu_custom_call.1} parent=31 // pred_region
          %246 = dma.done %s239, 128
        $region40: #{tpu_custom_call.1} parent=31 // pred_fallthru
          _
        %s247 = sand.u32 %s23, 1
        %s248 = scalar_lea.sflag [#allocation10], %s247
        %s249 = sand.u32 %s101, 1
        %s250 = smul.addr %s249, 8
        %s251 = scalar_lea.vmem [#allocation11], %s250
        // Predicated region
        $region41: #{tpu_custom_call.1} parent=31 // pred_check
          %p252 = pneg %p114
        $region42: #{tpu_custom_call.1} parent=31 // pred_check_branch
          %254 = sbr.rel (%p252) target = $region44
        $region43: #{tpu_custom_call.1} parent=31 // pred_region
          %255 = dma.done %s248, 128
        $region44: #{tpu_custom_call.1} parent=31 // pred_fallthru
          _
        %s256 = sand.u32 %s45, 1
        %s257 = scalar_lea.sflag [#allocation7], %s256
        %s258 = sand.u32 %s45, 1
        %s259 = smul.addr %s258, 8
        %s260 = scalar_lea.vmem [#allocation6], %s259
        %p261 = pneg %p58
        %p262 = pneg %p55
        %s263 = sand.u32 %s23, 1
        %s264 = scalar_lea.sflag [#allocation10], %s263
        %s265 = sand.u32 %s73, 1
        %s266 = smul.addr %s265, 8
        %s267 = scalar_lea.vmem [#allocation9], %s266
        %p268 = pneg %p86
        %p269 = pneg %p83
        %s270 = sand.u32 %s23, 1
        %s271 = scalar_lea.sflag [#allocation10], %s270
        %s272 = sand.u32 %s101, 1
        %s273 = smul.addr %s272, 8
        %s274 = scalar_lea.vmem [#allocation11], %s273
        %p275 = pneg %p114
        %p276 = pneg %p111
        %p277 = pneg %p140
        %p278 = pneg %p137
        %s279 = sand.u32 %s127, 1
        %s280 = scalar_lea.sflag [#allocation8], %s279
        %s281 = sand.u32 %s127, 1
        %s282 = scalar_lea.vmem [#allocation12], %s281
        %s283 = smul.u32 2, %s28
        %s284 = smul.u32 2, %s28
        %s285 = smul.u32 2, %s28
        %p286 = scmp.eq.s32.totalorder %s28, 0
        // Predicated region
        $region45: #{tpu_custom_call.1} parent=31 // pred_check
          %p287 = pneg %p286
        $region46: #{tpu_custom_call.1} parent=31 // pred_check_branch
          %289 = sbr.rel (%p287) target = $region48
        $region47: #{tpu_custom_call.1} parent=31 // pred_region
          %vm290 = vcmask 24576
          %291 = vst.msk [vmem:[#allocation2] sm:$0x1] %vm290, 0.0
          %292 = vst.msk [vmem:[#allocation3] sm:$0x1] %vm290, 0.0
          %293 = vst.msk [vmem:[#allocation4] sm:$0x1] %vm290, 0.0
          %294 = vst.msk [vmem:[#allocation5] sm:$0x1] %vm290, 0.0
        $region48: #{tpu_custom_call.1} parent=31 // pred_fallthru
          _
        %v295 = vld [vmem:[%s233] sm:$0xff]
        %v296 = vld [vmem:[%s242] sm:$0xff]
        %v297 = vld [vmem:[%s251] sm:$0xff]
        %v298 = vsub.f32 %v295, %v296
        %v299 = vmul.f32 %v298, %v297
        %v300 = vmul.f32 %v299, %v297
        %v301 = vld [vmem:[#allocation2] sm:$0x1]
        %v303 = vcombine.high %v297, %v297
        %vm305 = vcmask 1043456
        %v306 = vsel %vm305, %v297, 0.0
        %v307 = vsel %vm305, %v303, 0.0
        %v308 = vadd.f32 %v306, %v307
        %309 = vadd.xlane.f32.xlu0 %v308
        %v310 = vpop.xlane.xlu0 %309
        %v312 = vlaneseq
        %v313 = vshrl.u32 %v312, 7
        %v314 = vsub.s32 0, %v313
        %v315 = vrot.slane %v310, %v314
        %v316 = vlaneseq
        %v317 = vshrl.u32 %v316, 7
        %v318 = vsub.s32 1, %v317
        %v319 = vrot.slane %v310, %v318
        %v320 = vlaneseq
        %v321 = vshrl.u32 %v320, 7
        %v322 = vsub.s32 2, %v321
        %v323 = vrot.slane %v310, %v322
        %v324 = vlaneseq
        %v325 = vshrl.u32 %v324, 7
        %v326 = vsub.s32 3, %v325
        %v327 = vrot.slane %v310, %v326
        %v328 = vcombine.low %v315, %v319
        %v329 = vcombine.low %v323, %v327
        %v331 = vunpack.c.l.s4 1966171168
        %v332 = vunpack.c.0.s8 %v331
        %v333 = vlaneseq
        %v334 = vshrl.u32 %v333, 7
        %v335 = vsub.s32 %v332, %v334
        %v336 = vrot.slane %v328, %v335
        %v338 = vunpack.c.l.s4 1966171168
        %v339 = vunpack.c.0.s8 %v338
        %v340 = vlaneseq
        %v341 = vshrl.u32 %v340, 7
        %v342 = vsub.s32 %v339, %v341
        %v343 = vrot.slane %v329, %v342
        %v344 = vcombine.low %v336, %v343
        %v346 = vunpack.c.l.s4 1966171168
        %v347 = vunpack.c.0.s8 %v346
        %v348 = vlaneseq
        %v349 = vshrl.u32 %v348, 7
        %v350 = vsub.s32 %v347, %v349
        %v351 = vrot.slane %v344, %v350
        %352 = vset.pattern.permute.xlu0 0
        %353 = vperm.xlu0 %352, %v351
        %v354 = vpop.permute.xlu0 %353
        %v355 = vlaneseq
        %v356 = vand.u32 %v355, 127
        %v357 = vlaneseq
        %v358 = vshrl.u32 %v357, 7
        %v359 = vsub.s32 %v356, %v358
        %v360 = vrot.slane %v354, %v359
        %v362 = vunpack.c.l.s4 1966171168
        %v363 = vunpack.c.0.s8 %v362
        %v364 = vlaneseq
        %v365 = vshrl.u32 %v364, 7
        %v366 = vsub.s32 %v363, %v365
        %v367 = vrot.slane %v360, %v366
        %v369 = vunpack.c.l.s4 1966171168
        %v370 = vunpack.c.0.s8 %v369
        %v371 = vlaneseq
        %v372 = vshrl.u32 %v371, 7
        %v373 = vsub.s32 %v370, %v372
        %v374 = vrot.slane %v367, %v373
        %v376 = vadd.f32 %v301, %v374
        %vm377 = vcmask 24576
        %378 = vst.msk [vmem:[#allocation2] sm:$0x1] %vm377, %v376
        %v379 = vld [vmem:[#allocation3] sm:$0x1]
        %v381 = vcombine.high %v299, %v299
        %v383 = vsel %vm305, %v299, 0.0
        %v384 = vsel %vm305, %v381, 0.0
        %v385 = vadd.f32 %v383, %v384
        %386 = vadd.xlane.f32.xlu0 %v385
        %v387 = vpop.xlane.xlu0 %386
        %v389 = vlaneseq
        %v390 = vshrl.u32 %v389, 7
        %v391 = vsub.s32 0, %v390
        %v392 = vrot.slane %v387, %v391
        %v393 = vlaneseq
        %v394 = vshrl.u32 %v393, 7
        %v395 = vsub.s32 1, %v394
        %v396 = vrot.slane %v387, %v395
        %v397 = vlaneseq
        %v398 = vshrl.u32 %v397, 7
        %v399 = vsub.s32 2, %v398
        %v400 = vrot.slane %v387, %v399
        %v401 = vlaneseq
        %v402 = vshrl.u32 %v401, 7
        %v403 = vsub.s32 3, %v402
        %v404 = vrot.slane %v387, %v403
        %v405 = vcombine.low %v392, %v396
        %v406 = vcombine.low %v400, %v404
        %v408 = vunpack.c.l.s4 1966171168
        %v409 = vunpack.c.0.s8 %v408
        %v410 = vlaneseq
        %v411 = vshrl.u32 %v410, 7
        %v412 = vsub.s32 %v409, %v411
        %v413 = vrot.slane %v405, %v412
        %v415 = vunpack.c.l.s4 1966171168
        %v416 = vunpack.c.0.s8 %v415
        %v417 = vlaneseq
        %v418 = vshrl.u32 %v417, 7
        %v419 = vsub.s32 %v416, %v418
        %v420 = vrot.slane %v406, %v419
        %v421 = vcombine.low %v413, %v420
        %v423 = vunpack.c.l.s4 1966171168
        %v424 = vunpack.c.0.s8 %v423
        %v425 = vlaneseq
        %v426 = vshrl.u32 %v425, 7
        %v427 = vsub.s32 %v424, %v426
        %v428 = vrot.slane %v421, %v427
        %429 = vset.pattern.permute.xlu0 0
        %430 = vperm.xlu0 %429, %v428
        %v431 = vpop.permute.xlu0 %430
        %v432 = vlaneseq
        %v433 = vshrl.u32 %v432, 7
        %v434 = vsub.s32 %v356, %v433
        %v435 = vrot.slane %v431, %v434
        %v437 = vunpack.c.l.s4 1966171168
        %v438 = vunpack.c.0.s8 %v437
        %v439 = vlaneseq
        %v440 = vshrl.u32 %v439, 7
        %v441 = vsub.s32 %v438, %v440
        %v442 = vrot.slane %v435, %v441
        %v444 = vunpack.c.l.s4 1966171168
        %v445 = vunpack.c.0.s8 %v444
        %v446 = vlaneseq
        %v447 = vshrl.u32 %v446, 7
        %v448 = vsub.s32 %v445, %v447
        %v449 = vrot.slane %v442, %v448
        %v451 = vadd.f32 %v379, %v449
        %452 = vst.msk [vmem:[#allocation3] sm:$0x1] %vm377, %v451
        %v453 = vld [vmem:[#allocation4] sm:$0x1]
        %v455 = vcombine.high %v300, %v300
        %v457 = vsel %vm305, %v300, 0.0
        %v458 = vsel %vm305, %v455, 0.0
        %v459 = vadd.f32 %v457, %v458
        %460 = vadd.xlane.f32.xlu0 %v459
        %v461 = vpop.xlane.xlu0 %460
        %v463 = vlaneseq
        %v464 = vshrl.u32 %v463, 7
        %v465 = vsub.s32 0, %v464
        %v466 = vrot.slane %v461, %v465
        %v467 = vlaneseq
        %v468 = vshrl.u32 %v467, 7
        %v469 = vsub.s32 1, %v468
        %v470 = vrot.slane %v461, %v469
        %v471 = vlaneseq
        %v472 = vshrl.u32 %v471, 7
        %v473 = vsub.s32 2, %v472
        %v474 = vrot.slane %v461, %v473
        %v475 = vlaneseq
        %v476 = vshrl.u32 %v475, 7
        %v477 = vsub.s32 3, %v476
        %v478 = vrot.slane %v461, %v477
        %v479 = vcombine.low %v466, %v470
        %v480 = vcombine.low %v474, %v478
        %v482 = vunpack.c.l.s4 1966171168
        %v483 = vunpack.c.0.s8 %v482
        %v484 = vlaneseq
        %v485 = vshrl.u32 %v484, 7
        %v486 = vsub.s32 %v483, %v485
        %v487 = vrot.slane %v479, %v486
        %v489 = vunpack.c.l.s4 1966171168
        %v490 = vunpack.c.0.s8 %v489
        %v491 = vlaneseq
        %v492 = vshrl.u32 %v491, 7
        %v493 = vsub.s32 %v490, %v492
        %v494 = vrot.slane %v480, %v493
        %v495 = vcombine.low %v487, %v494
        %v497 = vunpack.c.l.s4 1966171168
        %v498 = vunpack.c.0.s8 %v497
        %v499 = vlaneseq
        %v500 = vshrl.u32 %v499, 7
        %v501 = vsub.s32 %v498, %v500
        %v502 = vrot.slane %v495, %v501
        %503 = vset.pattern.permute.xlu0 0
        %504 = vperm.xlu0 %503, %v502
        %v505 = vpop.permute.xlu0 %504
        %v506 = vlaneseq
        %v507 = vshrl.u32 %v506, 7
        %v508 = vsub.s32 %v356, %v507
        %v509 = vrot.slane %v505, %v508
        %v511 = vunpack.c.l.s4 1966171168
        %v512 = vunpack.c.0.s8 %v511
        %v513 = vlaneseq
        %v514 = vshrl.u32 %v513, 7
        %v515 = vsub.s32 %v512, %v514
        %v516 = vrot.slane %v509, %v515
        %v518 = vunpack.c.l.s4 1966171168
        %v519 = vunpack.c.0.s8 %v518
        %v520 = vlaneseq
        %v521 = vshrl.u32 %v520, 7
        %v522 = vsub.s32 %v519, %v521
        %v523 = vrot.slane %v516, %v522
        %v525 = vadd.f32 %v453, %v523
        %526 = vst.msk [vmem:[#allocation4] sm:$0x1] %vm377, %v525
        %v527 = vld [vmem:[#allocation5] sm:$0x1]
        %v528 = vmul.f32 %v299, %v300
        %v530 = vcombine.high %v528, %v528
        %v532 = vsel %vm305, %v528, 0.0
        %v533 = vsel %vm305, %v530, 0.0
        %v534 = vadd.f32 %v532, %v533
        %535 = vadd.xlane.f32.xlu0 %v534
        %v536 = vpop.xlane.xlu0 %535
        %v538 = vlaneseq
        %v539 = vshrl.u32 %v538, 7
        %v540 = vsub.s32 0, %v539
        %v541 = vrot.slane %v536, %v540
        %v542 = vlaneseq
        %v543 = vshrl.u32 %v542, 7
        %v544 = vsub.s32 1, %v543
        %v545 = vrot.slane %v536, %v544
        %v546 = vlaneseq
        %v547 = vshrl.u32 %v546, 7
        %v548 = vsub.s32 2, %v547
        %v549 = vrot.slane %v536, %v548
        %v550 = vlaneseq
        %v551 = vshrl.u32 %v550, 7
        %v552 = vsub.s32 3, %v551
        %v553 = vrot.slane %v536, %v552
        %v554 = vcombine.low %v541, %v545
        %v555 = vcombine.low %v549, %v553
        %v557 = vunpack.c.l.s4 1966171168
        %v558 = vunpack.c.0.s8 %v557
        %v559 = vlaneseq
        %v560 = vshrl.u32 %v559, 7
        %v561 = vsub.s32 %v558, %v560
        %v562 = vrot.slane %v554, %v561
        %v564 = vunpack.c.l.s4 1966171168
        %v565 = vunpack.c.0.s8 %v564
        %v566 = vlaneseq
        %v567 = vshrl.u32 %v566, 7
        %v568 = vsub.s32 %v565, %v567
        %v569 = vrot.slane %v555, %v568
        %v570 = vcombine.low %v562, %v569
        %v572 = vunpack.c.l.s4 1966171168
        %v573 = vunpack.c.0.s8 %v572
        %v574 = vlaneseq
        %v575 = vshrl.u32 %v574, 7
        %v576 = vsub.s32 %v573, %v575
        %v577 = vrot.slane %v570, %v576
        %578 = vset.pattern.permute.xlu0 0
        %579 = vperm.xlu0 %578, %v577
        %v580 = vpop.permute.xlu0 %579
        %v581 = vlaneseq
        %v582 = vshrl.u32 %v581, 7
        %v583 = vsub.s32 %v356, %v582
        %v584 = vrot.slane %v580, %v583
        %v586 = vunpack.c.l.s4 1966171168
        %v587 = vunpack.c.0.s8 %v586
        %v588 = vlaneseq
        %v589 = vshrl.u32 %v588, 7
        %v590 = vsub.s32 %v587, %v589
        %v591 = vrot.slane %v584, %v590
        %v593 = vunpack.c.l.s4 1966171168
        %v594 = vunpack.c.0.s8 %v593
        %v595 = vlaneseq
        %v596 = vshrl.u32 %v595, 7
        %v597 = vsub.s32 %v594, %v596
        %v598 = vrot.slane %v591, %v597
        %v600 = vadd.f32 %v527, %v598
        %601 = vst.msk [vmem:[#allocation5] sm:$0x1] %vm377, %v600
        // Predicated region
        $region49: #{tpu_custom_call.1} parent=31 // pred_check
          %p602 = pneg %p286
        $region50: #{tpu_custom_call.1} parent=31 // pred_check_branch
          %604 = sbr.rel (%p602) target = $region52
        $region51: #{tpu_custom_call.1} parent=31 // pred_region
          %v605 = vld [vmem:[#allocation2] sm:$0x1]
          %v606 = vsel %vm377, %v605, 0.0
          %607 = vadd.xlane.f32.xlu0 %v606
          %v608 = vpop.xlane.xlu0 %607
          %v609 = vrcp.pop %v608
          %v610 = vld [vmem:[#allocation3] sm:$0x1]
          %v611 = vmul.f32 %v610, %v609
          %v612 = vld [vmem:[#allocation5] sm:$0x1]
          %v613 = vmul.f32 %v611, 2.0
          %v614 = vld [vmem:[#allocation4] sm:$0x1]
          %v615 = vmul.f32 %v613, %v614
          %v616 = vsub.f32 %v612, %v615
          %v617 = vmul.f32 %v611, %v611
          %v618 = vmul.f32 %v617, %v605
          %v619 = vadd.f32 %v616, %v618
          %v620 = vmax.f32 %v619, 0.0
          %v621 = vmul.f32 %v620, %v609
          %v622 = vrsqrt.pop %v621
          %v623 = vmul.f32 %v621, %v622
          %vm624 = vcmp.eq.f32.partialorder %v621, inf
          %v625 = vsel %vm624, %v621, %v623
          %vm626 = vcmp.eq.f32.partialorder %v621, 0.0
          %v627 = vand.u32 %v621, 2147483648
          %v628 = vsel %vm626, %v627, %v625
          %629 = vst.msk [vmem:[%s282] sm:$0x1] %vm377, %v628
        $region52: #{tpu_custom_call.1} parent=31 // pred_fallthru
          _
        %s630 = sand.u32 %s127, 1
        %s631 = scalar_lea.sflag [#allocation8], %s630
        %s632 = sand.u32 %s127, 1
        %s633 = scalar_lea.vmem [#allocation12], %s632
        // Predicated region
        $region53: #{tpu_custom_call.1} parent=31 // pred_check
          %p634 = pneg %p137
        $region54: #{tpu_custom_call.1} parent=31 // pred_check_branch
          %636 = sbr.rel (%p634) target = $region56
        $region55: #{tpu_custom_call.1} parent=31 // pred_region
          %s638 = ssub.s32 16, 16
          %639 = vsyncadd %s631, %s638
          %s640 = smul.addr %s27, 16
          %s641 = scalar_lea.hbm %s3, %s640
          %s643 = sshll.u32 %s633, 4
          %s644 = int_to_ptr.vmem [resolvable:$true] %s643
          %646 = dma.vmem_to_hbm [thread:$0]  %s644, 16, %s641, %s631
        $region56: #{tpu_custom_call.1} parent=31 // pred_fallthru
          _
      $region32: #{tpu_custom_call.1} parent=5 // pred_fallthru
        _
      %p647 = scmp.le.s32.totalorder 2, %s18
      // Predicated region
      $region57: #{tpu_custom_call.1} parent=5 // pred_check
        %p648 = pneg %p647
      $region58: #{tpu_custom_call.1} parent=5 // pred_check_branch
        %650 = sbr.rel (%p648) target = $region60
      $region59: #{tpu_custom_call.1} parent=5 // pred_region
        %s651 = ssub.s32 %s18, 2
        // Predicated region
        $region61: #{tpu_custom_call.1} parent=59 // pred_check
          %p652 = pneg %p143
        $region62: #{tpu_custom_call.1} parent=59 // pred_check_branch
          %654 = sbr.rel (%p652) target = $region64
        $region63: #{tpu_custom_call.1} parent=59 // pred_region
          %s655 = sand.u32 %s128, 1
          %s656 = scalar_lea.sflag [#allocation8], %s655
          %s657 = sand.u32 %s128, 1
          %s658 = scalar_lea.vmem [#allocation12], %s657
          %659 = dma.done %s656, 16
        $region64: #{tpu_custom_call.1} parent=59 // pred_fallthru
          _
      $region60: #{tpu_custom_call.1} parent=5 // pred_fallthru
        _
    $region6: #{tpu_custom_call.1} parent=1 // loop_footer
      %s22 = sadd.s32 1, %s18
    $region7: #{tpu_custom_call.1} parent=1 // loop_footer_branch
      %17 = sbr.rel target = $region3
    $region8: #{tpu_custom_call.1} parent=1 // loop_exit
      _
    %660 = vsyncpa [#allocation7], 1
    %s661 = scalar_lea.sflag [#allocation7], 1
    %662 = vsyncpa %s661, 1
    %663 = vsyncpa [#allocation10], 1
    %s664 = scalar_lea.sflag [#allocation10], 1
    %665 = vsyncpa %s664, 1
    %666 = vsyncpa [#allocation8], 1
    %s667 = scalar_lea.sflag [#allocation8], 1
    %668 = vsyncpa %s667, 1

</llo_original>
